<compile_context>
chip_gen: v6e
topology: v6e:2x2x1
jax: 0.10.0
libtpu: 0.0.40
codegen_flags: <defaults>
</compile_context>

<pallas_src>
import jax
import jax.numpy as jnp
from jax.experimental import pallas as pl
from jax.experimental.pallas import tpu as pltpu


# ---------------------------------------------------------------------------
# Kernel 1: hoisted input projections (both directions, biases pre-folded)
#   xg_f = emb2d @ Wx_f(H,3H) + (bx_f + [bh_r, bh_z, 0])
#   xg_b = emb2d @ Wx_b(H,3H) + (bx_b + [bh_r, bh_z, 0])
# ---------------------------------------------------------------------------
def _xproj_kernel(emb_ref, wf_ref, bf_ref, wb_ref, bb_ref, xgf_ref, xgb_ref):
    e = emb_ref[...]                                                # (T*B, H)
    xgf_ref[...] = jnp.dot(e, wf_ref[...],
                           preferred_element_type=jnp.float32) + bf_ref[...]
    xgb_ref[...] = jnp.dot(e, wb_ref[...],
                           preferred_element_type=jnp.float32) + bb_ref[...]


# ---------------------------------------------------------------------------
# Kernel 2: bidirectional GRU recurrence (packed-sequence semantics),
# single invocation, in-kernel unrolled time loops, fused fwd+bwd output sum.
# ---------------------------------------------------------------------------
def _bigru_recurrence_kernel(len_ref, xgf_ref, xgb_ref,
                             whf_ref, whb_ref, bhnf_ref, bhnb_ref,
                             out_ref, hid_ref):
    T, B, H = out_ref.shape
    lens = len_ref[...]                          # (B, 1) int32
    whf, whb = whf_ref[...], whb_ref[...]        # (H, 3H) packed [r|z|n]
    bhnf, bhnb = bhnf_ref[...], bhnb_ref[...]    # (1, H)  (bh_n stays separate)

    def cell(xg, h, wh, bhn):
        # One packed h-projection per step (PyTorch GRU gate order r, z, n).
        gh = jnp.dot(h, wh, preferred_element_type=jnp.float32)    # (B, 3H)
        r = jax.nn.sigmoid(xg[:, :H] + gh[:, :H])
        z = jax.nn.sigmoid(xg[:, H:2 * H] + gh[:, H:2 * H])
        n = jnp.tanh(xg[:, 2 * H:] + r * (gh[:, 2 * H:] + bhn))
        return (1.0 - z) * n + z * h

    h0 = jnp.zeros((B, H), jnp.float32)

    # ---- forward direction: t = 0 .. T-1 ----
    def fwd_body(t, h):
        h_new = cell(xgf_ref[t], h, whf, bhnf)
        valid = t < lens                                   # (B, 1) bool
        out_ref[t] = jnp.where(valid, h_new, 0.0)          # zero past length
        return jnp.where(valid, h_new, h)                  # freeze past length

    h_f = jax.lax.fori_loop(0, T, fwd_body, h0, unroll=True)

    # ---- backward direction: s = T-1 .. 0, accumulate into out_ref ----
    def bwd_body(i, h):
        s = T - 1 - i
        h_new = cell(xgb_ref[s], h, whb, bhnb)
        valid = s < lens
        out_ref[s] = out_ref[s] + jnp.where(valid, h_new, 0.0)
        return jnp.where(valid, h_new, h)

    h_b = jax.lax.fori_loop(0, T, bwd_body, h0, unroll=True)

    # final hidden states written exactly once
    hid_ref[0] = h_f
    hid_ref[1] = h_b


# ---------------------------------------------------------------------------
# Wrapper: EncoderRNN.forward equivalent (hidden=None)
# ---------------------------------------------------------------------------
def encoder_rnn_forward(input_seq, input_lengths, emb_table, params):
    (wx_f, wh_f, bx_f, bh_f, wx_b, wh_b, bx_b, bh_b) = params

    # embedding lookup (glue, plain JAX gather)
    embedded = jnp.take(emb_table, input_seq, axis=0).astype(jnp.float32)  # (T,B,H)
    T, B, H = embedded.shape
    lens2d = input_lengths.astype(jnp.int32).reshape(B, 1)

    # --- pack weights lane-wise: (3,H,H) -> (H,3H), fold biases -------------
    def pack_w(w):
        return jnp.concatenate([w[0], w[1], w[2]], axis=1)          # (H, 3H)

    wxg_f, whg_f = pack_w(wx_f), pack_w(wh_f)
    wxg_b, whg_b = pack_w(wx_b), pack_w(wh_b)
    # fold bx (all gates) + bh_r + bh_z into the x-side preactivation
    bxg_f = jnp.concatenate([bx_f[0] + bh_f[0], bx_f[1] + bh_f[1], bx_f[2]], axis=1)
    bxg_b = jnp.concatenate([bx_b[0] + bh_b[0], bx_b[1] + bh_b[1], bx_b[2]], axis=1)
    bhn_f, bhn_b = bh_f[2], bh_b[2]                                 # (1, H)

    vmem = pl.BlockSpec(memory_space=pltpu.MemorySpace.VMEM)

    # --- kernel 1: big MXU-friendly input projections (M = T*B) ------------
    emb2d = embedded.reshape(T * B, H)
    xg_f2, xg_b2 = pl.pallas_call(
        _xproj_kernel,
        out_shape=(jax.ShapeDtypeStruct((T * B, 3 * H), jnp.float32),
                   jax.ShapeDtypeStruct((T * B, 3 * H), jnp.float32)),
        in_specs=[vmem] * 5,
        out_specs=(vmem, vmem),
    )(emb2d, wxg_f, bxg_f, wxg_b, bxg_b)
    xg_f = xg_f2.reshape(T, B, 3 * H)
    xg_b = xg_b2.reshape(T, B, 3 * H)

    # --- kernel 2: bidirectional recurrence, fully VMEM-resident -----------
    outputs, hidden = pl.pallas_call(
        _bigru_recurrence_kernel,
        out_shape=(jax.ShapeDtypeStruct((T, B, H), jnp.float32),
                   jax.ShapeDtypeStruct((2, B, H), jnp.float32)),
        in_specs=[vmem] * 7,
        out_specs=(vmem, vmem),
    )(lens2d, xg_f, xg_b, whg_f, whg_b, bhn_f, bhn_b)

    return outputs, hidden


# ---------------------------------------------------------------------------
# Pure-JAX reference with identical packed-sequence semantics (for checking)
# ---------------------------------------------------------------------------
def _reference_forward(embedded, input_lengths, params):
    (wx_f, wh_f, bx_f, bh_f, wx_b, wh_b, bx_b, bh_b) = params
    T, B, H = embedded.shape
    lens = input_lengths.astype(jnp.int32)[:, None]

    def cell(x, h, wx, wh, bx, bh):
        r = jax.nn.sigmoid(x @ wx[0] + bx[0] + h @ wh[0] + bh[0])
        z = jax.nn.sigmoid(x @ wx[1] + bx[1] + h @ wh[1] + bh[1])
        n = jnp.tanh(x @ wx[2] + bx[2] + r * (h @ wh[2] + bh[2]))
        return (1.0 - z) * n + z * h

    h0 = jnp.zeros((B, H), jnp.float32)
    ts = jnp.arange(T)

    def fwd_step(h, xt):
        x, tt = xt
        hn = cell(x, h, wx_f, wh_f, bx_f, bh_f)
        v = tt < lens
        h = jnp.where(v, hn, h)
        return h, jnp.where(v, hn, 0.0)

    def bwd_step(h, xt):
        x, tt = xt
        hn = cell(x, h, wx_b, wh_b, bx_b, bh_b)
        v = tt < lens
        h = jnp.where(v, hn, h)
        return h, jnp.where(v, hn, 0.0)

    h_f, out_f = jax.lax.scan(fwd_step, h0, (embedded, ts))
    h_b, out_b_rev = jax.lax.scan(bwd_step, h0, (embedded[::-1], ts[::-1]))
    out_b = out_b_rev[::-1]
    return out_f + out_b, jnp.stack([h_f, h_b])


if __name__ == "__main__":
    # Small shapes consistent with the module: seq T=8, batch B=4, hidden H=32
    T, B, H, VOCAB = 8, 4, 32, 50

    key = jax.random.PRNGKey(0)
    keys = jax.random.split(key, 12)
    scale = 1.0 / jnp.sqrt(jnp.float32(H))  # nn.GRU default init range

    def u(k, shape):
        return jax.random.uniform(k, shape, jnp.float32, -scale, scale)

    # Per-direction stacked gate weights: [r, z, n]; already transposed so x @ W
    wx_f = u(keys[0], (3, H, H)); wh_f = u(keys[1], (3, H, H))
    bx_f = u(keys[2], (3, 1, H)); bh_f = u(keys[3], (3, 1, H))
    wx_b = u(keys[4], (3, H, H)); wh_b = u(keys[5], (3, H, H))
    bx_b = u(keys[6], (3, 1, H)); bh_b = u(keys[7], (3, 1, H))
    params = (wx_f, wh_f, bx_f, bh_f, wx_b, wh_b, bx_b, bh_b)

    emb_table = jax.random.normal(keys[8], (VOCAB, H), jnp.float32)  # nn.Embedding ~ N(0,1)

    input_seq = jax.random.randint(keys[9], (T, B), 0, VOCAB, dtype=jnp.int32)
    # pack_padded_sequence requires sorted-descending lengths
    input_lengths = jnp.array([T, 6, 5, 3], dtype=jnp.int32)

    outputs, hidden = encoder_rnn_forward(input_seq, input_lengths, emb_table, params)
    outputs = jax.block_until_ready(outputs)
    hidden = jax.block_until_ready(hidden)

    # Cross-check against pure-JAX reference (same packed-GRU semantics)
    embedded = jnp.take(emb_table, input_seq, axis=0)
    ref_out, ref_hid = _reference_forward(embedded, input_lengths, params)
    assert outputs.shape == (T, B, H) and hidden.shape == (2, B, H)
    assert jnp.allclose(outputs, ref_out, atol=1e-4, rtol=1e-4)
    assert jnp.allclose(hidden, ref_hid, atol=1e-4, rtol=1e-4)

    print("KERNEL_OK")
</pallas_src>

<mosaic_0001>
module attributes {stable_mosaic.version = 11 : i64} {
  func.func @_xproj_kernel(%arg0: memref<32x32xf32, #tpu.memory_space<vmem>>, %arg1: memref<32x96xf32, #tpu.memory_space<vmem>>, %arg2: memref<1x96xf32, #tpu.memory_space<vmem>>, %arg3: memref<32x96xf32, #tpu.memory_space<vmem>>, %arg4: memref<1x96xf32, #tpu.memory_space<vmem>>, %arg5: memref<32x96xf32, #tpu.memory_space<vmem>>, %arg6: memref<32x96xf32, #tpu.memory_space<vmem>>) attributes {dimension_semantics = [], scalar_prefetch = 0 : i64, scratch_operands = 0 : i64, tpu.core_type = #tpu.core_type<tc>} {
    %c0 = arith.constant 0 : index
    %c0_0 = arith.constant 0 : index
    %0 = vector.load %arg0[%c0, %c0_0] : memref<32x32xf32, #tpu.memory_space<vmem>>, vector<32x32xf32>
    %c0_1 = arith.constant 0 : index
    %c0_2 = arith.constant 0 : index
    %1 = vector.load %arg1[%c0_1, %c0_2] : memref<32x96xf32, #tpu.memory_space<vmem>>, vector<32x96xf32>
    %cst = arith.constant dense<0.000000e+00> : vector<32x96xf32>
    %2 = tpu.matmul %0, %1, %cst {dimension_numbers = #tpu.dot_dimension_numbers<[1], [0], [0], [1], [0, 0, 1, 1], [], []>} : vector<32x32xf32>, vector<32x96xf32>, vector<32x96xf32> -> vector<32x96xf32>
    %c0_3 = arith.constant 0 : index
    %c0_4 = arith.constant 0 : index
    %3 = vector.load %arg2[%c0_3, %c0_4] : memref<1x96xf32, #tpu.memory_space<vmem>>, vector<1x96xf32>
    %4 = vector.broadcast %3 : vector<1x96xf32> to vector<32x96xf32>
    %5 = arith.addf %2, %4 : vector<32x96xf32>
    %c0_5 = arith.constant 0 : index
    %c0_6 = arith.constant 0 : index
    %6 = vector.load %arg5[%c0_5, %c0_6] : memref<32x96xf32, #tpu.memory_space<vmem>>, vector<32x96xf32>
    tpu.vector_store %arg5[%c0_5, %c0_6], %5 {strides = array<i32>} : memref<32x96xf32, #tpu.memory_space<vmem>>, vector<32x96xf32>,
    %c0_7 = arith.constant 0 : index
    %c0_8 = arith.constant 0 : index
    %7 = vector.load %arg3[%c0_7, %c0_8] : memref<32x96xf32, #tpu.memory_space<vmem>>, vector<32x96xf32>
    %cst_9 = arith.constant dense<0.000000e+00> : vector<32x96xf32>
    %8 = tpu.matmul %0, %7, %cst_9 {dimension_numbers = #tpu.dot_dimension_numbers<[1], [0], [0], [1], [0, 0, 1, 1], [], []>} : vector<32x32xf32>, vector<32x96xf32>, vector<32x96xf32> -> vector<32x96xf32>
    %c0_10 = arith.constant 0 : index
    %c0_11 = arith.constant 0 : index
    %9 = vector.load %arg4[%c0_10, %c0_11] : memref<1x96xf32, #tpu.memory_space<vmem>>, vector<1x96xf32>
    %10 = vector.broadcast %9 : vector<1x96xf32> to vector<32x96xf32>
    %11 = arith.addf %8, %10 : vector<32x96xf32>
    %c0_12 = arith.constant 0 : index
    %c0_13 = arith.constant 0 : index
    %12 = vector.load %arg6[%c0_12, %c0_13] : memref<32x96xf32, #tpu.memory_space<vmem>>, vector<32x96xf32>
    tpu.vector_store %arg6[%c0_12, %c0_13], %11 {strides = array<i32>} : memref<32x96xf32, #tpu.memory_space<vmem>>, vector<32x96xf32>,
    return
  }
}

</mosaic_0001>

<llo_original>
// kernel: tpu_custom_call.1
$region0: #{tpu_custom_call.1}
  #allocation0 [shape = 'u32[]', space=smem, size = 0x4, offset = 0x4, fixed_abs, tag = 'smem constant byte address 0x4 - core index']
  #allocation1 [shape = 'u32[144,128]{1,0:T(1,128)}', space=vmem, size = 0x12000, scoped, tag = 'internal scratch']
  %s0 = inlined_call_operand.hbm [shape: f32[32,32], index: 0, kind: input, shape index: {}]
  %s1 = inlined_call_operand.hbm [shape: f32[32,96], index: 1, kind: input, shape index: {}]
  %s2 = inlined_call_operand.vmem [shape: f32[1,96], index: 2, kind: input, shape index: {}]
  %s3 = inlined_call_operand.hbm [shape: f32[32,96], index: 3, kind: input, shape index: {}]
  %s4 = inlined_call_operand.vmem [shape: f32[1,96], index: 4, kind: input, shape index: {}]
  %s5 = inlined_call_operand.hbm [shape: f32[32,96], index: 5, kind: output, shape index: {0}]
  %s6 = inlined_call_operand.hbm [shape: f32[32,96], index: 6, kind: output, shape index: {1}]
  %7 = xla_tuple %s5, %s6
  %s8 = sld [smem:[#allocation0]]
  $region50: #{tpu_custom_call.1} parent=0
    _
  %s10 = ssub.s32 1, %s8
  %s11 = scalar_select 0, %s10, %s8
  $region1: #{tpu_custom_call.1} parent=0
    #allocation2 [shape = 'u8[16384]{0}', space=vmem, size = 0x4000, scoped, tag = 'input window, operand 0, single buffered']
    #allocation3 [shape = 's32[1]{0}', space=sflag, size = 0x4, scoped, tag = 'scoped memory for tpu_custom_call.1']
    #allocation4 [shape = 's32[1]{0}', space=sflag, size = 0x4, scoped, tag = 'scoped memory for tpu_custom_call.1']
    #allocation5 [shape = 'u8[16384]{0}', space=vmem, size = 0x4000, scoped, tag = 'input window, operand 1, single buffered']
    #allocation6 [shape = 's32[1]{0}', space=sflag, size = 0x4, scoped, tag = 'scoped memory for tpu_custom_call.1']
    #allocation7 [shape = 'u8[16384]{0}', space=vmem, size = 0x4000, scoped, tag = 'input window, operand 3, single buffered']
    #allocation8 [shape = 'u8[16384]{0}', space=vmem, size = 0x4000, scoped, tag = 'output window, operand 0, single buffered']
    #allocation9 [shape = 'u8[16384]{0}', space=vmem, size = 0x4000, scoped, tag = 'output window, operand 1, single buffered']
    #allocation10 [shape = 's32[1]{0}', space=sflag, size = 0x4, scoped, tag = 'scoped memory for tpu_custom_call.1']
    %12 = vsyncpa [#allocation3], 0
    %13 = vsyncpa [#allocation6], 0
    %14 = vsyncpa [#allocation4], 0
    %15 = vsyncpa [#allocation10], 0
    // Predicated region
    $region2: #{tpu_custom_call.1} parent=1 // pred_check
      _
    $region3: #{tpu_custom_call.1} parent=1 // pred_check_branch
      %17 = sbr.rel (0) target = $region5
    $region4: #{tpu_custom_call.1} parent=1 // pred_region
      %s19 = ssub.s32 512, 512
      %20 = vsyncadd [#allocation3], %s19
      %s21 = sshll.u32 [#allocation2], 4
      %s22 = int_to_ptr.vmem [resolvable:$true] %s21
      %27 = dma.hbm_to_vmem [thread:$0]  %s0, 512, %s22, [#allocation3], 128, 128, 8
    $region5: #{tpu_custom_call.1} parent=1 // pred_fallthru
      _
    // Predicated region
    $region6: #{tpu_custom_call.1} parent=1 // pred_check
      _
    $region7: #{tpu_custom_call.1} parent=1 // pred_check_branch
      %29 = sbr.rel (0) target = $region9
    $region8: #{tpu_custom_call.1} parent=1 // pred_region
      %s31 = ssub.s32 512, 512
      %32 = vsyncadd [#allocation6], %s31
      %s33 = sshll.u32 [#allocation5], 4
      %s34 = int_to_ptr.vmem [resolvable:$true] %s33
      %39 = dma.hbm_to_vmem [thread:$0]  %s1, 512, %s34, [#allocation6], 128, 128, 8
    $region9: #{tpu_custom_call.1} parent=1 // pred_fallthru
      _
    // Predicated region
    $region10: #{tpu_custom_call.1} parent=1 // pred_check
      _
    $region11: #{tpu_custom_call.1} parent=1 // pred_check_branch
      %41 = sbr.rel (0) target = $region13
    $region12: #{tpu_custom_call.1} parent=1 // pred_region
      _
    $region13: #{tpu_custom_call.1} parent=1 // pred_fallthru
      _
    // Predicated region
    $region14: #{tpu_custom_call.1} parent=1 // pred_check
      _
    $region15: #{tpu_custom_call.1} parent=1 // pred_check_branch
      %43 = sbr.rel (0) target = $region17
    $region16: #{tpu_custom_call.1} parent=1 // pred_region
      %s45 = ssub.s32 512, 512
      %46 = vsyncadd [#allocation6], %s45
      %s47 = sshll.u32 [#allocation7], 4
      %s48 = int_to_ptr.vmem [resolvable:$true] %s47
      %53 = dma.hbm_to_vmem [thread:$0]  %s3, 512, %s48, [#allocation6], 128, 128, 8
    $region17: #{tpu_custom_call.1} parent=1 // pred_fallthru
      _
    // Predicated region
    $region18: #{tpu_custom_call.1} parent=1 // pred_check
      _
    $region19: #{tpu_custom_call.1} parent=1 // pred_check_branch
      %55 = sbr.rel (0) target = $region21
    $region20: #{tpu_custom_call.1} parent=1 // pred_region
      _
    $region21: #{tpu_custom_call.1} parent=1 // pred_fallthru
      _
    // Predicated region
    $region22: #{tpu_custom_call.1} parent=1 // pred_check
      _
    $region23: #{tpu_custom_call.1} parent=1 // pred_check_branch
      %57 = sbr.rel (0) target = $region25
    $region24: #{tpu_custom_call.1} parent=1 // pred_region
      %58 = dma.done [#allocation3], 512
    $region25: #{tpu_custom_call.1} parent=1 // pred_fallthru
      _
    // Predicated region
    $region26: #{tpu_custom_call.1} parent=1 // pred_check
      _
    $region27: #{tpu_custom_call.1} parent=1 // pred_check_branch
      %60 = sbr.rel (0) target = $region29
    $region28: #{tpu_custom_call.1} parent=1 // pred_region
      %61 = dma.done [#allocation6], 512
    $region29: #{tpu_custom_call.1} parent=1 // pred_fallthru
      _
    // Predicated region
    $region30: #{tpu_custom_call.1} parent=1 // pred_check
      _
    $region31: #{tpu_custom_call.1} parent=1 // pred_check_branch
      %63 = sbr.rel (0) target = $region33
    $region32: #{tpu_custom_call.1} parent=1 // pred_region
      %64 = dma.done [#allocation6], 512
    $region33: #{tpu_custom_call.1} parent=1 // pred_fallthru
      _
    %v65 = vld [vmem:[#allocation2] sm:$0xff]
    %v66 = vld [vmem:[#allocation2 + $0x8] sm:$0xff]
    %v67 = vld [vmem:[#allocation2 + $0x10] sm:$0xff]
    %v68 = vld [vmem:[#allocation2 + $0x18] sm:$0xff]
    %v69 = vld [vmem:[#allocation5] sm:$0xff]
    %v70 = vld [vmem:[#allocation5 + $0x8] sm:$0xff]
    %v71 = vld [vmem:[#allocation5 + $0x10] sm:$0xff]
    %v72 = vld [vmem:[#allocation5 + $0x18] sm:$0xff]
    %v73 = vld [vmem:[%s2] sm:$0x1]
    %v75 = vlaneseq
    %v76 = vshrl.u32 %v75, 7
    %v77 = vsub.s32 0, %v76
    %v78 = vrot.slane %v73, %v77
    %vm80 = vcmask 261120
    %v82 = vsel %vm80, %v65, 0
    %v85 = vsel %vm80, %v66, 0
    %v88 = vsel %vm80, %v67, 0
    %v91 = vsel %vm80, %v68, 0
    %93 = vmatprep.subr.mxu0 0.0
    %94 = vmatpush1.msra.mxu0 0.0
    %95 = vmatprep.subr.mxu0 0.0
    %96 = vmatpush1.msra.mxu0 0.0
    %97 = vmatprep.subr.mxu0 0.0
    %98 = vmatpush1.msra.mxu0 0.0
    %99 = vmatprep.subr.mxu0 0.0
    %100 = vmatpush1.msra.mxu0 0.0
    %101 = vmatprep.subr.mxu0 0.0
    %102 = vmatpush1.msra.mxu0 0.0
    %103 = vmatprep.subr.mxu0 0.0
    %104 = vmatpush1.msra.mxu0 0.0
    %105 = vmatprep.subr.mxu0 0.0
    %106 = vmatpush1.msra.mxu0 0.0
    %107 = vmatprep.subr.mxu0 0.0
    %108 = vmatpush1.msra.mxu0 0.0
    %109 = vmatprep.subr.mxu0 0.0
    %110 = vmatpush1.msra.mxu0 0.0
    %111 = vmatprep.subr.mxu0 0.0
    %112 = vmatpush1.msra.mxu0 0.0
    %113 = vmatprep.subr.mxu0 0.0
    %114 = vmatpush1.msra.mxu0 0.0
    %115 = vmatprep.subr.mxu0 0.0
    %116 = vmatpush1.msra.mxu0 0.0
    %117 = vmatprep.subr.mxu0 0.0
    %118 = vmatpush1.msra.mxu0 %v72
    %119 = vmatprep.subr.mxu0 0.0
    %120 = vmatpush1.msra.mxu0 %v71
    %121 = vmatprep.subr.mxu0 0.0
    %122 = vmatpush1.msra.mxu0 %v70
    %123 = vmatprep.subr.mxu0 0.0
    %124 = vmatpush1.msra.mxu0 %v69
    %125 = vmatprep.subr.mxu0 0.0
    %126 = vmatpush2.msra.mxu0 0.0
    %127 = vmatprep.subr.mxu0 0.0
    %128 = vmatpush2.msra.mxu0 0.0
    %129 = vmatprep.subr.mxu0 0.0
    %130 = vmatpush2.msra.mxu0 0.0
    %131 = vmatprep.subr.mxu0 0.0
    %132 = vmatpush2.msra.mxu0 0.0
    %133 = vmatprep.subr.mxu0 0.0
    %134 = vmatpush2.msra.mxu0 0.0
    %135 = vmatprep.subr.mxu0 0.0
    %136 = vmatpush2.msra.mxu0 0.0
    %137 = vmatprep.subr.mxu0 0.0
    %138 = vmatpush2.msra.mxu0 0.0
    %139 = vmatprep.subr.mxu0 0.0
    %140 = vmatpush2.msra.mxu0 0.0
    %141 = vmatprep.subr.mxu0 0.0
    %142 = vmatpush2.msra.mxu0 0.0
    %143 = vmatprep.subr.mxu0 0.0
    %144 = vmatpush2.msra.mxu0 0.0
    %145 = vmatprep.subr.mxu0 0.0
    %146 = vmatpush2.msra.mxu0 0.0
    %147 = vmatprep.subr.mxu0 0.0
    %148 = vmatpush2.msra.mxu0 0.0
    %149 = vmatprep.subr.mxu0 0.0
    %150 = vmatpush2.msra.mxu0 0.0
    %151 = vmatprep.subr.mxu0 0.0
    %152 = vmatpush2.msra.mxu0 0.0
    %153 = vmatprep.subr.mxu0 0.0
    %154 = vmatpush2.msra.mxu0 0.0
    %155 = vmatprep.subr.mxu0 0.0
    %156 = vmatpush2.msra.mxu0 0.0
    %157 = vmatprep.mubr.f32.mxu0 0.0
    %158 = vmatmul.mubr.f32.gmra.mxu0 %v82
    %v159 = vpop.f32.mrf.mxu0
    %v160 = vadd.f32 %v78, %v159
    %v161 = vpop.f32.mrf.mxu0
    %162 = vmatprep.mubr.f32.mxu0 0.0
    %163 = vmatmul.mubr.f32.gmra.mxu0 %v85
    %v164 = vpop.f32.mrf.mxu0
    %v165 = vadd.f32 %v78, %v164
    %v166 = vpop.f32.mrf.mxu0
    %167 = vmatprep.mubr.f32.mxu0 0.0
    %168 = vmatmul.mubr.f32.gmra.mxu0 %v88
    %v169 = vpop.f32.mrf.mxu0
    %v170 = vadd.f32 %v78, %v169
    %v171 = vpop.f32.mrf.mxu0
    %172 = vmatprep.mubr.f32.mxu0 0.0
    %173 = vmatmul.mubr.f32.gmra.mxu0 %v91
    %v174 = vpop.f32.mrf.mxu0
    %v175 = vadd.f32 %v78, %v174
    %v176 = vpop.f32.mrf.mxu0
    %177 = vdwg.mxu0
    %vm178 = vcmask 785408
    %179 = vst.msk [vmem:[#allocation8] sm:$0xff] %vm178, %v160
    %180 = vst.msk [vmem:[#allocation8 + $0x8] sm:$0xff] %vm178, %v165
    %181 = vst.msk [vmem:[#allocation8 + $0x10] sm:$0xff] %vm178, %v170
    %182 = vst.msk [vmem:[#allocation8 + $0x18] sm:$0xff] %vm178, %v175
    %v183 = vld [vmem:[#allocation7] sm:$0xff]
    %v184 = vld [vmem:[#allocation7 + $0x8] sm:$0xff]
    %v185 = vld [vmem:[#allocation7 + $0x10] sm:$0xff]
    %v186 = vld [vmem:[#allocation7 + $0x18] sm:$0xff]
    %v187 = vld [vmem:[%s4] sm:$0x1]
    %v189 = vlaneseq
    %v190 = vshrl.u32 %v189, 7
    %v191 = vsub.s32 0, %v190
    %v192 = vrot.slane %v187, %v191
    %194 = vmatprep.subr.mxu0 0.0
    %195 = vmatpush1.msra.mxu0 0.0
    %196 = vmatprep.subr.mxu0 0.0
    %197 = vmatpush1.msra.mxu0 0.0
    %198 = vmatprep.subr.mxu0 0.0
    %199 = vmatpush1.msra.mxu0 0.0
    %200 = vmatprep.subr.mxu0 0.0
    %201 = vmatpush1.msra.mxu0 0.0
    %202 = vmatprep.subr.mxu0 0.0
    %203 = vmatpush1.msra.mxu0 0.0
    %204 = vmatprep.subr.mxu0 0.0
    %205 = vmatpush1.msra.mxu0 0.0
    %206 = vmatprep.subr.mxu0 0.0
    %207 = vmatpush1.msra.mxu0 0.0
    %208 = vmatprep.subr.mxu0 0.0
    %209 = vmatpush1.msra.mxu0 0.0
    %210 = vmatprep.subr.mxu0 0.0
    %211 = vmatpush1.msra.mxu0 0.0
    %212 = vmatprep.subr.mxu0 0.0
    %213 = vmatpush1.msra.mxu0 0.0
    %214 = vmatprep.subr.mxu0 0.0
    %215 = vmatpush1.msra.mxu0 0.0
    %216 = vmatprep.subr.mxu0 0.0
    %217 = vmatpush1.msra.mxu0 0.0
    %218 = vmatprep.subr.mxu0 0.0
    %219 = vmatpush1.msra.mxu0 %v186
    %220 = vmatprep.subr.mxu0 0.0
    %221 = vmatpush1.msra.mxu0 %v185
    %222 = vmatprep.subr.mxu0 0.0
    %223 = vmatpush1.msra.mxu0 %v184
    %224 = vmatprep.subr.mxu0 0.0
    %225 = vmatpush1.msra.mxu0 %v183
    %226 = vmatprep.subr.mxu0 0.0
    %227 = vmatpush2.msra.mxu0 0.0
    %228 = vmatprep.subr.mxu0 0.0
    %229 = vmatpush2.msra.mxu0 0.0
    %230 = vmatprep.subr.mxu0 0.0
    %231 = vmatpush2.msra.mxu0 0.0
    %232 = vmatprep.subr.mxu0 0.0
    %233 = vmatpush2.msra.mxu0 0.0
    %234 = vmatprep.subr.mxu0 0.0
    %235 = vmatpush2.msra.mxu0 0.0
    %236 = vmatprep.subr.mxu0 0.0
    %237 = vmatpush2.msra.mxu0 0.0
    %238 = vmatprep.subr.mxu0 0.0
    %239 = vmatpush2.msra.mxu0 0.0
    %240 = vmatprep.subr.mxu0 0.0
    %241 = vmatpush2.msra.mxu0 0.0
    %242 = vmatprep.subr.mxu0 0.0
    %243 = vmatpush2.msra.mxu0 0.0
    %244 = vmatprep.subr.mxu0 0.0
    %245 = vmatpush2.msra.mxu0 0.0
    %246 = vmatprep.subr.mxu0 0.0
    %247 = vmatpush2.msra.mxu0 0.0
    %248 = vmatprep.subr.mxu0 0.0
    %249 = vmatpush2.msra.mxu0 0.0
    %250 = vmatprep.subr.mxu0 0.0
    %251 = vmatpush2.msra.mxu0 0.0
    %252 = vmatprep.subr.mxu0 0.0
    %253 = vmatpush2.msra.mxu0 0.0
    %254 = vmatprep.subr.mxu0 0.0
    %255 = vmatpush2.msra.mxu0 0.0
    %256 = vmatprep.subr.mxu0 0.0
    %257 = vmatpush2.msra.mxu0 0.0
    %258 = vmatprep.mubr.f32.mxu0 0.0
    %259 = vmatmul.mubr.f32.gmra.mxu0 %v82
    %v260 = vpop.f32.mrf.mxu0
    %v261 = vadd.f32 %v192, %v260
    %v262 = vpop.f32.mrf.mxu0
    %263 = vmatprep.mubr.f32.mxu0 0.0
    %264 = vmatmul.mubr.f32.gmra.mxu0 %v85
    %v265 = vpop.f32.mrf.mxu0
    %v266 = vadd.f32 %v192, %v265
    %v267 = vpop.f32.mrf.mxu0
    %268 = vmatprep.mubr.f32.mxu0 0.0
    %269 = vmatmul.mubr.f32.gmra.mxu0 %v88
    %v270 = vpop.f32.mrf.mxu0
    %v271 = vadd.f32 %v192, %v270
    %v272 = vpop.f32.mrf.mxu0
    %273 = vmatprep.mubr.f32.mxu0 0.0
    %274 = vmatmul.mubr.f32.gmra.mxu0 %v91
    %v275 = vpop.f32.mrf.mxu0
    %v276 = vadd.f32 %v192, %v275
    %v277 = vpop.f32.mrf.mxu0
    %278 = vdwg.mxu0
    %279 = vst.msk [vmem:[#allocation9] sm:$0xff] %vm178, %v261
    %280 = vst.msk [vmem:[#allocation9 + $0x8] sm:$0xff] %vm178, %v266
    %281 = vst.msk [vmem:[#allocation9 + $0x10] sm:$0xff] %vm178, %v271
    %282 = vst.msk [vmem:[#allocation9 + $0x18] sm:$0xff] %vm178, %v276
    // Predicated region
    $region34: #{tpu_custom_call.1} parent=1 // pred_check
      _
    $region35: #{tpu_custom_call.1} parent=1 // pred_check_branch
      %284 = sbr.rel (0) target = $region37
    $region36: #{tpu_custom_call.1} parent=1 // pred_region
      %s286 = ssub.s32 512, 512
      %287 = vsyncadd [#allocation4], %s286
      %s288 = sshll.u32 [#allocation8], 4
      %s289 = int_to_ptr.vmem [resolvable:$true] %s288
      %294 = dma.vmem_to_hbm [thread:$0]  %s289, 512, %s5, [#allocation4], 128, 128, 8
    $region37: #{tpu_custom_call.1} parent=1 // pred_fallthru
      _
    // Predicated region
    $region38: #{tpu_custom_call.1} parent=1 // pred_check
      _
    $region39: #{tpu_custom_call.1} parent=1 // pred_check_branch
      %296 = sbr.rel (0) target = $region41
    $region40: #{tpu_custom_call.1} parent=1 // pred_region
      %s298 = ssub.s32 512, 512
      %299 = vsyncadd [#allocation10], %s298
      %s300 = sshll.u32 [#allocation9], 4
      %s301 = int_to_ptr.vmem [resolvable:$true] %s300
      %306 = dma.vmem_to_hbm [thread:$0]  %s301, 512, %s6, [#allocation10], 128, 128, 8
    $region41: #{tpu_custom_call.1} parent=1 // pred_fallthru
      _
    // Predicated region
    $region42: #{tpu_custom_call.1} parent=1 // pred_check
      _
    $region43: #{tpu_custom_call.1} parent=1 // pred_check_branch
      %308 = sbr.rel (0) target = $region45
    $region44: #{tpu_custom_call.1} parent=1 // pred_region
      %309 = dma.done [#allocation4], 512
    $region45: #{tpu_custom_call.1} parent=1 // pred_fallthru
      _
    // Predicated region
    $region46: #{tpu_custom_call.1} parent=1 // pred_check
      _
    $region47: #{tpu_custom_call.1} parent=1 // pred_check_branch
      %311 = sbr.rel (0) target = $region49
    $region48: #{tpu_custom_call.1} parent=1 // pred_region
      %312 = dma.done [#allocation10], 512
    $region49: #{tpu_custom_call.1} parent=1 // pred_fallthru
      _
    %313 = vsyncpa [#allocation3], 1
    %314 = vsyncpa [#allocation6], 1
    %315 = vsyncpa [#allocation4], 1
    %316 = vsyncpa [#allocation10], 1

</llo_original>
